<compile_context>
chip_gen: v7x
topology: tpu7x:2x2x1
jax: 0.10.0
libtpu: 0.0.40
codegen_flags: <defaults>
</compile_context>

<pallas_src>
import functools
import math

import jax
import jax.numpy as jnp
from jax.experimental import pallas as pl
from jax.experimental.pallas import tpu as pltpu


def eca_kernel_size(channels=None, kernel_size=3, gamma=2, beta=1):
    if channels is not None:
        t = int(abs(math.log(channels, 2) + beta) / gamma)
        kernel_size = max(t if t % 2 else t + 1, 3)
    assert kernel_size % 2 == 1
    return kernel_size


def _conv_gate(pooled_rows, w_ref, kernel_size):
    """k-tap zero-padded Conv1d + sigmoid on a lane-major (rows, C) f32 tile."""
    pad = (kernel_size - 1) // 2
    rows, c = pooled_rows.shape
    zpad = jnp.zeros((rows, pad), jnp.float32)
    ypad = jnp.concatenate([zpad, pooled_rows, zpad], axis=1)     # (rows, C+2p)
    acc = w_ref[0] * ypad[:, 0:c]
    for j in range(1, kernel_size):
        acc = acc + w_ref[j] * ypad[:, j:j + c]
    return jax.nn.sigmoid(acc)                                    # (rows, C)


# ----------------------------- single-pass path -----------------------------

def _eca_kernel(w_ref, x_ref, o_ref, *, kernel_size, hw, bt):
    """One (bt, C, HW) block: pool -> channel conv -> sigmoid -> scale."""
    inv_hw = 1.0 / hw

    # Global average pool, f32 accumulation: one cross-lane reduce per element.
    cols = [jnp.sum(x_ref[b], axis=1, keepdims=True, dtype=jnp.float32)
            for b in range(bt)]                                   # each (C, 1)
    pooled_cb = cols[0] if bt == 1 else jnp.concatenate(cols, axis=1)  # (C, bt)

    # Lane-major tile for the channel conv (C on the lane axis): O(k*bt*C) VPU
    # work on a lane-dense tile instead of masked 1-lane column traffic.
    pooled = jnp.transpose(pooled_cb) * inv_hw                    # (bt, C)
    gate = _conv_gate(pooled, w_ref, kernel_size)                 # (bt, C) f32

    # Back to (C, bt): each element's gate is a broadcastable (C, 1) column.
    gate_cb = jnp.transpose(gate).astype(o_ref.dtype)             # (C, bt)

    for b in range(bt):                                           # bt small, unrolled
        o_ref[b] = x_ref[b] * gate_cb[:, b:b + 1]


def _single_pass(x2, weight, kernel_size, n, c, hw, budget):
    elem_bytes = c * hw * x2.dtype.itemsize
    # ~4 MiB blocks amortize the ~0.35 us/step cost on every generation (and
    # suit v7x's 3.2 TB/s) while staying far below VMEM once double-buffered.
    # Keep at least min(n, 8) grid steps so DMA/compute overlap and both v7x
    # TensorCores get work.  n % bt == 0 is NOT required: the ragged last
    # block is handled by masked OOB reads/writes (elements are independent).
    target_block = 4 << 20
    max_unroll = 32                       # bound the unrolled per-element loop
    bt = min(n, max_unroll,
             max(1, target_block // max(elem_bytes, 1)),
             max(1, n // min(n, 8)),
             max(1, (budget - (8 << 20)) // max(4 * elem_bytes, 1)))
    bt = max(1, int(bt))
    grid0 = pl.cdiv(n, bt)
    block_bytes = bt * elem_bytes
    vmem_limit = int(min(budget, 4 * block_bytes + (8 << 20)))

    return pl.pallas_call(
        functools.partial(_eca_kernel, kernel_size=kernel_size, hw=hw, bt=bt),
        out_shape=jax.ShapeDtypeStruct((n, c, hw), x2.dtype),
        grid=(grid0,),
        in_specs=[
            pl.BlockSpec(memory_space=pltpu.MemorySpace.SMEM),    # conv taps (k,)
            pl.BlockSpec((bt, c, hw), lambda i: (i, 0, 0)),
        ],
        out_specs=pl.BlockSpec((bt, c, hw), lambda i: (i, 0, 0)),
        compiler_params=pltpu.CompilerParams(
            dimension_semantics=("parallel",),
            vmem_limit_bytes=vmem_limit),
    )(weight, x2)


# ------------------------- two-pass path (huge C*HW) -------------------------

def _pool_gate_kernel(w_ref, x_ref, g_ref, *, kernel_size, hw, thw):
    """Pass 1: accumulate the spatial sum per (N, C) across HW tiles in the
    f32 output block, then conv + sigmoid at the last tile."""
    c = x_ref.shape[1]
    hh = pl.program_id(1)

    @pl.when(hh == 0)
    def _():
        g_ref[...] = jnp.zeros_like(g_ref)

    xs = x_ref[...]                                               # (1, C, thw)
    if hw % thw != 0:                                             # ragged last tile
        pos = jax.lax.broadcasted_iota(jnp.int32, xs.shape, 2) + hh * thw
        xs = jnp.where(pos < hw, xs, jnp.zeros_like(xs))
    g_ref[...] += jnp.sum(xs, axis=2, keepdims=True, dtype=jnp.float32)

    @pl.when(hh == pl.num_programs(1) - 1)
    def _():
        pooled = jnp.transpose(g_ref[0]) * (1.0 / hw)             # (1, C) lane-major
        gate = _conv_gate(pooled, w_ref, kernel_size)             # (1, C)
        g_ref[0] = jnp.transpose(gate)                            # (C, 1) f32


def _scale_kernel(g_ref, x_ref, o_ref):
    """Pass 2: broadcast the per-(N, C) gate over an HW tile."""
    o_ref[...] = x_ref[...] * g_ref[...].astype(o_ref.dtype)


def _two_pass(x2, weight, kernel_size, n, c, hw):
    itemsize = x2.dtype.itemsize
    # HW tile: lane-aligned (multiple of 128) unless HW itself is smaller,
    # sized to ~2 MiB of input per block.
    if hw <= 128:
        thw = hw
    else:
        thw = max(128, min((2 << 20) // max(c * itemsize, 1), hw) // 128 * 128)
    grid_hw = pl.cdiv(hw, thw)
    vmem_limit = int(4 * c * thw * itemsize + (8 << 20))

    gates = pl.pallas_call(
        functools.partial(_pool_gate_kernel, kernel_size=kernel_size,
                          hw=hw, thw=thw),
        out_shape=jax.ShapeDtypeStruct((n, c, 1), jnp.float32),
        grid=(n, grid_hw),
        in_specs=[
            pl.BlockSpec(memory_space=pltpu.MemorySpace.SMEM),
            pl.BlockSpec((1, c, thw), lambda b, hh: (b, 0, hh)),
        ],
        out_specs=pl.BlockSpec((1, c, 1), lambda b, hh: (b, 0, 0)),
        compiler_params=pltpu.CompilerParams(
            dimension_semantics=("parallel", "arbitrary"),
            vmem_limit_bytes=vmem_limit),
    )(weight, x2)

    return pl.pallas_call(
        _scale_kernel,
        out_shape=jax.ShapeDtypeStruct((n, c, hw), x2.dtype),
        grid=(n, grid_hw),
        in_specs=[
            pl.BlockSpec((1, c, 1), lambda b, hh: (b, 0, 0)),
            pl.BlockSpec((1, c, thw), lambda b, hh: (b, 0, hh)),
        ],
        out_specs=pl.BlockSpec((1, c, thw), lambda b, hh: (b, 0, hh)),
        compiler_params=pltpu.CompilerParams(
            dimension_semantics=("parallel", "parallel"),
            vmem_limit_bytes=vmem_limit),
    )(gates, x2)


# ---------------------------------- wrapper ----------------------------------

@functools.partial(jax.jit, static_argnums=(2,))
def eca_forward(x, weight, kernel_size):
    n, c, h, w = x.shape
    hw = h * w
    weight = weight.reshape(-1)
    x2 = x.reshape(n, c, hw)              # fused bitcast under jit
    elem_bytes = c * hw * x.dtype.itemsize

    # Generation-aware VMEM budget (v5e/v6e: 128 MiB, v7x: 64 MiB).
    try:
        vmem_cap = int(pltpu.get_tpu_info().vmem_capacity_bytes)
    except Exception:
        vmem_cap = 64 << 20               # conservative fallback (v7x)
    budget = (3 * vmem_cap) // 4          # headroom for Mosaic internals

    if 4 * elem_bytes + (8 << 20) <= budget:
        out2 = _single_pass(x2, weight, kernel_size, n, c, hw, budget)
    else:
        out2 = _two_pass(x2, weight, kernel_size, n, c, hw)

    return out2.reshape(n, c, h, w)


def eca_reference(x, weight, kernel_size):
    """Pure-JAX reference matching the PyTorch forward exactly."""
    pad = (kernel_size - 1) // 2
    y = x.mean(axis=(2, 3))                                       # (N, C)
    yp = jnp.pad(y, ((0, 0), (pad, pad)))
    conv = sum(weight[j] * yp[:, j:j + x.shape[1]] for j in range(kernel_size))
    gate = jax.nn.sigmoid(conv)[:, :, None, None]
    return x * gate


if __name__ == "__main__":
    N, C, H, W = 2, 4, 16, 16
    k = eca_kernel_size(channels=C)                               # -> 3 for C=4

    key = jax.random.PRNGKey(0)
    kx, kw = jax.random.split(key)
    x = jax.random.normal(kx, (N, C, H, W), dtype=jnp.float32)

    # nn.Conv1d(1, 1, k, bias=False): weight shape (1, 1, k); deterministic
    # kaiming-uniform-style init (bound = 1/sqrt(fan_in) = 1/sqrt(k)).
    bound = 1.0 / math.sqrt(k)
    weight = jax.random.uniform(kw, (k,), dtype=jnp.float32,
                                minval=-bound, maxval=bound)

    out = jax.block_until_ready(eca_forward(x, weight, k))

    ref = eca_reference(x, weight, k)
    assert out.shape == x.shape
    assert jnp.allclose(out, ref, atol=1e-5, rtol=1e-5), "mismatch vs reference"

    print("KERNEL_OK")
</pallas_src>

<mosaic_0001>
module attributes {stable_mosaic.version = 11 : i64} {
  func.func @_eca_kernel(%arg0: i32, %arg1: memref<3xf32, #tpu.memory_space<smem>>, %arg2: memref<1x4x256xf32, #tpu.memory_space<vmem>>, %arg3: memref<1x4x256xf32, #tpu.memory_space<vmem>>) attributes {dimension_semantics = [#tpu.dimension_semantics<parallel>], iteration_bounds = array<i64: 2>, scalar_prefetch = 0 : i64, scratch_operands = 0 : i64, tpu.core_type = #tpu.core_type<tc>, window_params = [{transform_indices = @transform_0, window_bounds = array<i64: 3>}, {transform_indices = @transform_1, window_bounds = array<i64: 1, 4, 256>}, {transform_indices = @transform_2, window_bounds = array<i64: 1, 4, 256>}]} {
    %c0 = arith.constant 0 : index
    %c0_0 = arith.constant 0 : index
    %c0_1 = arith.constant 0 : index
    %0 = vector.load %arg2[%c0, %c0_0, %c0_1] : memref<1x4x256xf32, #tpu.memory_space<vmem>>, vector<1x4x256xf32>
    %1 = vector.shape_cast %0 : vector<1x4x256xf32> to vector<4x256xf32>
    %cst = arith.constant dense<0.000000e+00> : vector<4xf32>
    %2 = vector.multi_reduction <add>, %1, %cst [1] : vector<4x256xf32> to vector<4xf32>
    %3 = vector.shape_cast %2 : vector<4xf32> to vector<4x1xf32>
    %4 = tpu.transpose %3, [1, 0] : vector<4x1xf32> -> vector<1x4xf32>
    %cst_2 = arith.constant 3.906250e-03 : f32
    %5 = vector.broadcast %cst_2 : f32 to vector<1x4xf32>
    %6 = arith.mulf %4, %5 : vector<1x4xf32>
    %cst_3 = arith.constant 0.000000e+00 : f32
    %7 = vector.broadcast %cst_3 : f32 to vector<1x1xf32>
    %8 = tpu.concatenate %7, %6, %7 in 1 : vector<1x1xf32>, vector<1x4xf32>, vector<1x1xf32> -> vector<1x6xf32>
    %c0_4 = arith.constant 0 : index
    %9 = memref.load %arg1[%c0_4] : memref<3xf32, #tpu.memory_space<smem>>
    %10 = vector.extract_strided_slice %8 {offsets = [0, 0], sizes = [1, 4], strides = [1, 1]} : vector<1x6xf32> to vector<1x4xf32>
    %11 = vector.broadcast %9 : f32 to vector<1x4xf32>
    %12 = arith.mulf %11, %10 : vector<1x4xf32>
    %c1 = arith.constant 1 : index
    %13 = memref.load %arg1[%c1] : memref<3xf32, #tpu.memory_space<smem>>
    %14 = vector.extract_strided_slice %8 {offsets = [0, 1], sizes = [1, 4], strides = [1, 1]} : vector<1x6xf32> to vector<1x4xf32>
    %15 = vector.broadcast %13 : f32 to vector<1x4xf32>
    %16 = arith.mulf %15, %14 : vector<1x4xf32>
    %17 = arith.addf %12, %16 : vector<1x4xf32>
    %c2 = arith.constant 2 : index
    %18 = memref.load %arg1[%c2] : memref<3xf32, #tpu.memory_space<smem>>
    %19 = vector.extract_strided_slice %8 {offsets = [0, 2], sizes = [1, 4], strides = [1, 1]} : vector<1x6xf32> to vector<1x4xf32>
    %20 = vector.broadcast %18 : f32 to vector<1x4xf32>
    %21 = arith.mulf %20, %19 : vector<1x4xf32>
    %22 = arith.addf %17, %21 : vector<1x4xf32>
    %23 = arith.negf %22 : vector<1x4xf32>
    %24 = math.exp %23 : vector<1x4xf32>
    %cst_5 = arith.constant 1.000000e+00 : f32
    %25 = vector.broadcast %cst_5 : f32 to vector<1x4xf32>
    %26 = arith.addf %25, %24 : vector<1x4xf32>
    %27 = arith.divf %25, %26 : vector<1x4xf32>
    %28 = tpu.transpose %27, [1, 0] : vector<1x4xf32> -> vector<4x1xf32>
    %c0_6 = arith.constant 0 : index
    %c0_7 = arith.constant 0 : index
    %c0_8 = arith.constant 0 : index
    %29 = vector.load %arg2[%c0_6, %c0_7, %c0_8] : memref<1x4x256xf32, #tpu.memory_space<vmem>>, vector<1x4x256xf32>
    %30 = vector.shape_cast %29 : vector<1x4x256xf32> to vector<4x256xf32>
    %31 = vector.broadcast %28 : vector<4x1xf32> to vector<4x256xf32>
    %32 = arith.mulf %30, %31 : vector<4x256xf32>
    %c0_9 = arith.constant 0 : index
    %c0_10 = arith.constant 0 : index
    %c0_11 = arith.constant 0 : index
    %33 = vector.load %arg3[%c0_9, %c0_10, %c0_11] : memref<1x4x256xf32, #tpu.memory_space<vmem>>, vector<1x4x256xf32>
    %34 = vector.shape_cast %33 : vector<1x4x256xf32> to vector<4x256xf32>
    %35 = vector.shape_cast %32 : vector<4x256xf32> to vector<1x4x256xf32>
    tpu.vector_store %arg3[%c0_9, %c0_10, %c0_11], %35 {strides = array<i32>} : memref<1x4x256xf32, #tpu.memory_space<vmem>>, vector<1x4x256xf32>,
    return
  }
  func.func @transform_0(%arg0: i32) -> i32 {
    %c0_i32 = arith.constant 0 : i32
    %c0_i32_0 = arith.constant 0 : i32
    return %c0_i32 : i32
  }
  func.func @transform_1(%arg0: i32) -> (i32, i32, i32) {
    %c0_i32 = arith.constant 0 : i32
    %c0_i32_0 = arith.constant 0 : i32
    %c0_i32_1 = arith.constant 0 : i32
    return %arg0, %c0_i32, %c0_i32_0 : i32, i32, i32
  }
  func.func @transform_2(%arg0: i32) -> (i32, i32, i32) {
    %c0_i32 = arith.constant 0 : i32
    %c0_i32_0 = arith.constant 0 : i32
    %c0_i32_1 = arith.constant 0 : i32
    return %arg0, %c0_i32, %c0_i32_0 : i32, i32, i32
  }
}

</mosaic_0001>

<llo_original>
// kernel: eca_forward.1
$region0: #{eca_forward.1}
  #allocation0 [shape = 'u32[]', space=smem, size = 0x4, offset = 0x4, fixed_abs, tag = 'smem constant byte address 0x4 - core index']
  #allocation1 [shape = 'u32[144,128]{1,0:T(1,128)}', space=vmem, size = 0x12000, scoped, tag = 'internal scratch']
  %s0 = inlined_call_operand.vmem [shape: f32[3], index: 0, kind: input, shape index: {}]
  %s1 = inlined_call_operand.vmem [shape: f32[2,4,256], index: 1, kind: input, shape index: {}]
  %s2 = inlined_call_operand.vmem [shape: f32[2,4,256], index: 2, kind: output, shape index: {}]
  %s3 = sld [smem:[#allocation0]]
  $region45: #{eca_forward.1} parent=0
    _
  %s5 = ssub.s32 1, %s3
  %s6 = scalar_select 0, %s5, %s3
  $region1: #{eca_forward.1} parent=0
    #allocation2 [shape = 'u8[512]{0}', space=smem, size = 0x200, scoped, tag = 'input window, operand 0, single buffered']
    #allocation3 [shape = 's32[2]{0}', space=sflag, size = 0x8, scoped, tag = 'scoped memory for eca_forward.1']
    %7 = vsyncpa [#allocation3], 0
    loop: start=0, step=1, limit=4
    $region2: #{eca_forward.1} parent=1 // loop_pre_header
      _
    $region3: #{eca_forward.1} parent=1 // loop_header
      %s9 = sphi 0, %s13
      %p10 = scmp.ge.s32.totalorder %s9, 4
      %s17 = sphi 0, %s17
      %s19 = sphi 0, %s17
      %s20 = sphi 0, %s19
      %s34 = sphi 0, %s20
      %s40 = sphi 0, %s42
      %s43 = sphi 0, %s40
      %s44 = sphi 0, %s43
      %s60 = sphi 0, %s44
      %s66 = sphi 0, %s68
      %s69 = sphi 0, %s66
      %s70 = sphi 0, %s69
      %s86 = sphi 0, %s70
    $region4: #{eca_forward.1} parent=1 // loop_header_branch
      %12 = sbr.rel (%p10) target = $region8
    $region5: #{eca_forward.1} parent=1 // loop_body
      %s14 = ssub.s32 %s9, 1
      %s15 = ssub.s32 %s9, 2
      %s16 = sadd.s32 %s9, 1
      %s18 = sadd.s32 %s17, 1
      %p21 = scmp.eq.s32.totalorder %s9, 1
      %p22 = scmp.ne.s32.totalorder %s17, %s19
      %p23 = scmp.eq.s32.totalorder %s9, 0
      %p24 = por %p22, %p23
      %p25 = scmp.ne.s32.totalorder %s17, %s19
      %p26 = scmp.eq.s32.totalorder %s14, 1
      %p27 = por %p25, %p26
      %p28 = scmp.ne.s32.totalorder %s19, %s20
      %p29 = scmp.eq.s32.totalorder %s14, 0
      %p30 = por %p28, %p29
      %p31 = scmp.ne.s32.totalorder %s19, %s20
      %p32 = scmp.eq.s32.totalorder %s15, 1
      %p33 = por %p31, %p32
      %p35 = scmp.ne.s32.totalorder %s20, %s34
      %p36 = scmp.eq.s32.totalorder %s15, 0
      %p37 = por %p35, %p36
      %s38 = ssub.s32 %s9, %s16
      %p39 = scmp.eq.s32.totalorder %s38, 0
      %s41 = sadd.s32 %s40, 1
      %s42 = scalar_select %p39, %s40, %s41
      %p45 = pneg %p39
      %p46 = scmp.eq.s32.totalorder %s9, 1
      %p47 = por %p45, %p46
      %p48 = scmp.ne.s32.totalorder %s40, %s43
      %p49 = scmp.eq.s32.totalorder %s9, 0
      %p50 = por %p48, %p49
      %p51 = scmp.ne.s32.totalorder %s40, %s43
      %p52 = scmp.eq.s32.totalorder %s14, 1
      %p53 = por %p51, %p52
      %p54 = scmp.ne.s32.totalorder %s43, %s44
      %p55 = scmp.eq.s32.totalorder %s14, 0
      %p56 = por %p54, %p55
      %p57 = scmp.ne.s32.totalorder %s43, %s44
      %p58 = scmp.eq.s32.totalorder %s15, 1
      %p59 = por %p57, %p58
      %p61 = scmp.ne.s32.totalorder %s44, %s60
      %p62 = scmp.eq.s32.totalorder %s15, 0
      %p63 = por %p61, %p62
      %s64 = ssub.s32 %s9, %s16
      %p65 = scmp.eq.s32.totalorder %s64, 0
      %s67 = sadd.s32 %s66, 1
      %s68 = scalar_select %p65, %s66, %s67
      %p71 = pneg %p65
      %p72 = scmp.eq.s32.totalorder %s9, 1
      %p73 = por %p71, %p72
      %p74 = scmp.ne.s32.totalorder %s66, %s69
      %p75 = scmp.eq.s32.totalorder %s9, 0
      %p76 = por %p74, %p75
      %p77 = scmp.ne.s32.totalorder %s66, %s69
      %p78 = scmp.eq.s32.totalorder %s14, 1
      %p79 = por %p77, %p78
      %p80 = scmp.ne.s32.totalorder %s69, %s70
      %p81 = scmp.eq.s32.totalorder %s14, 0
      %p82 = por %p80, %p81
      %p83 = scmp.ne.s32.totalorder %s69, %s70
      %p84 = scmp.eq.s32.totalorder %s15, 1
      %p85 = por %p83, %p84
      %p87 = scmp.ne.s32.totalorder %s70, %s86
      %p88 = scmp.eq.s32.totalorder %s15, 0
      %p89 = por %p87, %p88
      %p90 = scmp.le.s32.totalorder 1, %s9
      %p91 = scmp.lt.s32.totalorder %s9, 3
      %p92 = pnand %p90, %p91
      %p93 = pneg %p92
      // Predicated region
      $region9: #{eca_forward.1} parent=5 // pred_check
        _
      $region10: #{eca_forward.1} parent=5 // pred_check_branch
        %95 = sbr.rel (%p92) target = $region12
      $region11: #{eca_forward.1} parent=5 // pred_region
        %s96 = ssub.s32 %s9, 1
        // Predicated region
        $region13: #{eca_forward.1} parent=11 // pred_check
          %p97 = pneg %p30
        $region14: #{eca_forward.1} parent=11 // pred_check_branch
          %99 = sbr.rel (%p97) target = $region16
        $region15: #{eca_forward.1} parent=11 // pred_region
          %s101 = ssub.s32 16, 16
          %102 = vsyncadd [#allocation3], %s101
          %s104 = sshll.u32 %s0, 4
          %s105 = int_to_ptr.vmem [resolvable:$true] %s104
          %107 = dma.vmem_to_smem %s105, 16, [#allocation2], [#allocation3]
        $region16: #{eca_forward.1} parent=11 // pred_fallthru
          _
      $region12: #{eca_forward.1} parent=5 // pred_fallthru
        _
      %p108 = scmp.lt.s32.totalorder %s9, 2
      // Predicated region
      $region17: #{eca_forward.1} parent=5 // pred_check
        %p109 = pneg %p108
      $region18: #{eca_forward.1} parent=5 // pred_check_branch
        %111 = sbr.rel (%p109) target = $region20
      $region19: #{eca_forward.1} parent=5 // pred_region
        // Predicated region
        $region21: #{eca_forward.1} parent=19 // pred_check
          %p112 = pneg %p50
        $region22: #{eca_forward.1} parent=19 // pred_check_branch
          %114 = sbr.rel (%p112) target = $region24
        $region23: #{eca_forward.1} parent=19 // pred_region
          %p115 = scmp.lt.s32.totalorder %s9, 1
          %s116 = scalar_select %p115, %s9, 1
          %s117 = smul.addr %s116, 2
          %s118 = smul.addr %s117, 4
          %s119 = scalar_lea.vmem %s1, %s118
        $region24: #{eca_forward.1} parent=19 // pred_fallthru
          _
      $region20: #{eca_forward.1} parent=5 // pred_fallthru
        _
      %p120 = scmp.le.s32.totalorder 1, %s9
      %p121 = scmp.lt.s32.totalorder %s9, 3
      %p122 = pnand %p120, %p121
      %p123 = pneg %p122
      // Predicated region
      $region25: #{eca_forward.1} parent=5 // pred_check
        _
      $region26: #{eca_forward.1} parent=5 // pred_check_branch
        %125 = sbr.rel (%p122) target = $region28
      $region27: #{eca_forward.1} parent=5 // pred_region
        %s126 = ssub.s32 %s9, 1
        // Predicated region
        $region29: #{eca_forward.1} parent=27 // pred_check
          %p127 = pneg %p30
        $region30: #{eca_forward.1} parent=27 // pred_check_branch
          %129 = sbr.rel (%p127) target = $region32
        $region31: #{eca_forward.1} parent=27 // pred_region
          %130 = dma.done [#allocation3], 16
        $region32: #{eca_forward.1} parent=27 // pred_fallthru
          _
        %131 = sfence
        %p132 = pneg %p30
        %p133 = pneg %p27
        %p134 = scmp.lt.s32.totalorder %s14, 1
        %s135 = scalar_select %p134, %s14, 1
        %s136 = smul.addr %s135, 2
        %s137 = smul.addr %s136, 4
        %s138 = scalar_lea.vmem %s1, %s137
        %p139 = pneg %p56
        %p140 = pneg %p53
        %p141 = pneg %p82
        %p142 = pneg %p79
        %p143 = scmp.lt.s32.totalorder %s14, 1
        %s144 = scalar_select %p143, %s14, 1
        %s145 = smul.addr %s144, 2
        %s146 = smul.addr %s145, 4
        %s147 = scalar_lea.vmem %s2, %s146
        %p148 = scmp.lt.s32.totalorder %s14, 1
        %s149 = scalar_select %p148, %s14, 1
        %s150 = smul.addr %s149, 2
        %s151 = smul.addr %s150, 4
        %s152 = scalar_lea.vmem %s1, %s151
        %p153 = scmp.lt.s32.totalorder %s14, 1
        %s154 = scalar_select %p153, %s14, 1
        %s155 = smul.addr %s154, 2
        %s156 = smul.addr %s155, 4
        %s157 = scalar_lea.vmem %s2, %s156
        %v158 = vld [vmem:[%s152] sm:$0xff]
        %v160 = vcombine.high %v158, %v158
        %vm162 = vcmask 1043456
        %v163 = vsel %vm162, %v158, 0.0
        %v164 = vsel %vm162, %v160, 0.0
        %v165 = vadd.f32 %v163, %v164
        %166 = vadd.xlane.f32.xlu0 %v165
        %v167 = vpop.xlane.xlu0 %166
        %168 = vxpose.xlu0.b32.start [1/16] %v167, 128
        %169 = vxpose.xlu0.b32.cont [2/16] 0.0, 128
        %170 = vxpose.xlu0.b32.cont [3/16] 0.0, 128
        %171 = vxpose.xlu0.b32.cont [4/16] 0.0, 128
        %172 = vxpose.xlu0.b32.cont [5/16] 0.0, 128
        %173 = vxpose.xlu0.b32.cont [6/16] 0.0, 128
        %174 = vxpose.xlu0.b32.cont [7/16] 0.0, 128
        %175 = vxpose.xlu0.b32.cont [8/16] 0.0, 128
        %176 = vxpose.xlu0.b32.cont [9/16] 0.0, 128
        %177 = vxpose.xlu0.b32.cont [10/16] 0.0, 128
        %178 = vxpose.xlu0.b32.cont [11/16] 0.0, 128
        %179 = vxpose.xlu0.b32.cont [12/16] 0.0, 128
        %180 = vxpose.xlu0.b32.cont [13/16] 0.0, 128
        %181 = vxpose.xlu0.b32.cont [14/16] 0.0, 128
        %182 = vxpose.xlu0.b32.cont [15/16] 0.0, 128
        %183 = vxpose.xlu0.b32.end [16/16] 0.0, 128
        %v184 = vpop.trf.xlu0
        %v185 = vpop.trf.xlu0
        %v186 = vpop.trf.xlu0
        %v187 = vpop.trf.xlu0
        %v188 = vpop.trf.xlu0
        %v189 = vpop.trf.xlu0
        %v190 = vpop.trf.xlu0
        %v191 = vpop.trf.xlu0
        %v192 = vpop.trf.xlu0
        %v193 = vpop.trf.xlu0
        %v194 = vpop.trf.xlu0
        %v195 = vpop.trf.xlu0
        %v196 = vpop.trf.xlu0
        %v197 = vpop.trf.xlu0
        %v198 = vpop.trf.xlu0
        %v199 = vpop.trf.xlu0
        %v200 = vmul.f32 %v184, 0.00390625
        %202 = vrot.lane.b32.xlu0 %v200, 1
        %v203 = vpop.permute.xlu0 %202
        %vm205 = vcmask 7168
        %v206 = vsel %vm205, 0.0, %v203
        %vm207 = vcmask 39936
        %v208 = vsel %vm207, %v206, 0.0
        %s209 = sld [smem:[#allocation2]]
        %v210 = vstv %s209
        %v211 = vmul.f32 %v210, %v208
        %s212 = sld [smem:[#allocation2 + $0x1]]
        %v213 = vstv %s212
        %v214 = vmul.f32 %v213, %v208
        %216 = vrot.lane.b32.xlu0 %v214, 127
        %v217 = vpop.permute.xlu0 %216
        %v219 = vadd.f32 %v211, %v217
        %s220 = sld [smem:[#allocation2 + $0x2]]
        %v221 = vstv %s220
        %v222 = vmul.f32 %v221, %v208
        %224 = vrot.lane.b32.xlu0 %v222, 126
        %v225 = vpop.permute.xlu0 %224
        %v227 = vadd.f32 %v219, %v225
        %v228 = vxor.u32 %v227, 2147483648
        %v229 = vmul.f32 %v228, 1.442695
        %v230 = vpow.pop %v229
        %v231 = vadd.f32 %v230, 1.0
        %v232 = vrcp.pop %v231
        %v233 = vmul.f32 1.0, %v232
        %234 = vxpose.xlu0.b32.start [1/16] %v233, 128
        %235 = vxpose.xlu0.b32.cont [2/16] 0.0, 128
        %236 = vxpose.xlu0.b32.cont [3/16] 0.0, 128
        %237 = vxpose.xlu0.b32.cont [4/16] 0.0, 128
        %238 = vxpose.xlu0.b32.cont [5/16] 0.0, 128
        %239 = vxpose.xlu0.b32.cont [6/16] 0.0, 128
        %240 = vxpose.xlu0.b32.cont [7/16] 0.0, 128
        %241 = vxpose.xlu0.b32.cont [8/16] 0.0, 128
        %242 = vxpose.xlu0.b32.cont [9/16] 0.0, 128
        %243 = vxpose.xlu0.b32.cont [10/16] 0.0, 128
        %244 = vxpose.xlu0.b32.cont [11/16] 0.0, 128
        %245 = vxpose.xlu0.b32.cont [12/16] 0.0, 128
        %246 = vxpose.xlu0.b32.cont [13/16] 0.0, 128
        %247 = vxpose.xlu0.b32.cont [14/16] 0.0, 128
        %248 = vxpose.xlu0.b32.cont [15/16] 0.0, 128
        %249 = vxpose.xlu0.b32.end [16/16] 0.0, 128
        %v250 = vpop.trf.xlu0
        %v251 = vpop.trf.xlu0
        %v252 = vpop.trf.xlu0
        %v253 = vpop.trf.xlu0
        %v254 = vpop.trf.xlu0
        %v255 = vpop.trf.xlu0
        %v256 = vpop.trf.xlu0
        %v257 = vpop.trf.xlu0
        %v258 = vpop.trf.xlu0
        %v259 = vpop.trf.xlu0
        %v260 = vpop.trf.xlu0
        %v261 = vpop.trf.xlu0
        %v262 = vpop.trf.xlu0
        %v263 = vpop.trf.xlu0
        %v264 = vpop.trf.xlu0
        %v265 = vpop.trf.xlu0
        %267 = vset.pattern.permute.xlu0 0
        %268 = vperm.xlu0 %267, %v250
        %v269 = vpop.permute.xlu0 %268
        %v271 = vunpack.c.l.s4 839922192
        %v272 = vunpack.c.0.s8 %v271
        %v273 = vlaneseq
        %v274 = vshrl.u32 %v273, 7
        %v275 = vsub.s32 %v272, %v274
        %v276 = vrot.slane %v269, %v275
        %v278 = vmul.f32 %v158, %v276
        %279 = vst [vmem:[%s157] sm:$0xff] %v278
        %p280 = scmp.lt.s32.totalorder %s14, 1
        %s281 = scalar_select %p280, %s14, 1
        %s282 = smul.addr %s281, 2
        %s283 = smul.addr %s282, 4
        %s284 = scalar_lea.vmem %s2, %s283
        // Predicated region
        $region33: #{eca_forward.1} parent=27 // pred_check
          %p285 = pneg %p79
        $region34: #{eca_forward.1} parent=27 // pred_check_branch
          %287 = sbr.rel (%p285) target = $region36
        $region35: #{eca_forward.1} parent=27 // pred_region
          _
        $region36: #{eca_forward.1} parent=27 // pred_fallthru
          _
      $region28: #{eca_forward.1} parent=5 // pred_fallthru
        _
      %p288 = scmp.le.s32.totalorder 2, %s9
      // Predicated region
      $region37: #{eca_forward.1} parent=5 // pred_check
        %p289 = pneg %p288
      $region38: #{eca_forward.1} parent=5 // pred_check_branch
        %291 = sbr.rel (%p289) target = $region40
      $region39: #{eca_forward.1} parent=5 // pred_region
        %s292 = ssub.s32 %s9, 2
        // Predicated region
        $region41: #{eca_forward.1} parent=39 // pred_check
          %p293 = pneg %p85
        $region42: #{eca_forward.1} parent=39 // pred_check_branch
          %295 = sbr.rel (%p293) target = $region44
        $region43: #{eca_forward.1} parent=39 // pred_region
          %p296 = scmp.lt.s32.totalorder %s15, 1
          %s297 = scalar_select %p296, %s15, 1
          %s298 = smul.addr %s297, 2
          %s299 = smul.addr %s298, 4
          %s300 = scalar_lea.vmem %s2, %s299
        $region44: #{eca_forward.1} parent=39 // pred_fallthru
          _
      $region40: #{eca_forward.1} parent=5 // pred_fallthru
        _
    $region6: #{eca_forward.1} parent=1 // loop_footer
      %s13 = sadd.s32 1, %s9
    $region7: #{eca_forward.1} parent=1 // loop_footer_branch
      %8 = sbr.rel target = $region3
    $region8: #{eca_forward.1} parent=1 // loop_exit
      _
    %301 = vsyncpa [#allocation3], 1
    %s302 = scalar_lea.sflag [#allocation3], 1
    %303 = vsyncpa %s302, 1

</llo_original>
